<compile_context>
chip_gen: v6e
topology: v6e:2x2x1
jax: 0.10.0
libtpu: 0.0.40
codegen_flags: <defaults>
</compile_context>

<pallas_src>
import jax
import jax.numpy as jnp
from jax import lax
from jax.experimental import pallas as pl
from jax.experimental.pallas import tpu as pltpu

BN_EPS = 1e-5


def gene_module_kernel(x_ref, w_ref, b_ref, gamma_ref, beta_ref, o_ref):
    """Fused Linear(F->1) + tanh + BatchNorm1d(1) (training-mode stats).

    x_ref:     (B, F)  input features (natural PyTorch layout)      [VMEM]
    w_ref:     (1, F)  linear weight (natural nn.Linear layout)     [VMEM]
    b_ref:     (1, 1)  linear bias                                  [SMEM]
    gamma_ref: (1, 1)  batchnorm weight                             [SMEM]
    beta_ref:  (1, 1)  batchnorm bias                               [SMEM]
    o_ref:     (B, 1)  output                                       [VMEM]
    """
    x = x_ref[...]                        # (B, F)
    w = w_ref[...]                        # (1, F)

    # Linear(F -> 1): VPU broadcast-multiply + lane (XLU) reduce, no MXU.
    z = jnp.sum(x * w, axis=-1, keepdims=True) + b_ref[0, 0]    # (B, 1)

    # tanh (EUP)
    a = jnp.tanh(z)                       # (B, 1)

    # BatchNorm1d over the batch (sublane axis): training mode, biased var.
    mean = jnp.mean(a, axis=0, keepdims=True)                   # (1, 1)
    var = jnp.mean((a - mean) ** 2, axis=0, keepdims=True)      # (1, 1)

    # Fold gamma / rsqrt / mean / beta into two scalars, then a single
    # mul+add on the batch vector.
    scale = gamma_ref[0, 0] * lax.rsqrt(var + BN_EPS)           # (1, 1)
    shift = beta_ref[0, 0] - mean * scale                       # (1, 1)
    o_ref[...] = a * scale + shift


def gene_module_forward(x, w, b, gamma, beta):
    """x: (B, F) float32, w: (1, F), b/gamma/beta: (1, 1) -> (B, 1) float32."""
    B, F = x.shape

    return pl.pallas_call(
        gene_module_kernel,
        out_shape=jax.ShapeDtypeStruct((B, 1), jnp.float32),
        # Whole-array blocks (no grid): B and F are tiny, so the batch
        # reduction for the BN statistics happens in one kernel invocation.
        in_specs=[
            pl.BlockSpec(memory_space=pltpu.MemorySpace.VMEM),  # x
            pl.BlockSpec(memory_space=pltpu.MemorySpace.VMEM),  # w
            pl.BlockSpec(memory_space=pltpu.MemorySpace.SMEM),  # b
            pl.BlockSpec(memory_space=pltpu.MemorySpace.SMEM),  # gamma
            pl.BlockSpec(memory_space=pltpu.MemorySpace.SMEM),  # beta
        ],
        out_specs=pl.BlockSpec(memory_space=pltpu.MemorySpace.VMEM),
    )(x, w, b, gamma, beta)


if __name__ == "__main__":
    B = 8            # batch
    F = 32           # gene_feature_dim

    key = jax.random.PRNGKey(0)
    kx, kw, kb = jax.random.split(key, 3)

    # Deterministic parameter init (synthetic; mirrors nn.Linear(F, 1) shapes,
    # BatchNorm1d(1) gamma=1 / beta=0 defaults).
    x = jax.random.normal(kx, (B, F), dtype=jnp.float32)
    limit = 1.0 / jnp.sqrt(jnp.float32(F))
    w = jax.random.uniform(kw, (1, F), minval=-limit, maxval=limit,
                           dtype=jnp.float32)
    b = jax.random.uniform(kb, (1, 1), minval=-limit, maxval=limit,
                           dtype=jnp.float32)
    gamma = jnp.ones((1, 1), dtype=jnp.float32)
    beta = jnp.zeros((1, 1), dtype=jnp.float32)

    out = gene_module_forward(x, w, b, gamma, beta)
    out = jax.block_until_ready(out)

    # Pure-JAX reference check (same semantics as the PyTorch forward).
    z_ref = x @ w.T + b[0, 0]
    a_ref = jnp.tanh(z_ref)
    m = jnp.mean(a_ref, axis=0, keepdims=True)
    v = jnp.mean((a_ref - m) ** 2, axis=0, keepdims=True)
    ref = (a_ref - m) / jnp.sqrt(v + BN_EPS) * gamma[0, 0] + beta[0, 0]
    assert out.shape == (B, 1)
    assert jnp.max(jnp.abs(out - ref)) < 1e-5

    print("KERNEL_OK")
</pallas_src>

<mosaic_0001>
module attributes {stable_mosaic.version = 11 : i64} {
  func.func @gene_module_kernel(%arg0: memref<8x32xf32, #tpu.memory_space<vmem>>, %arg1: memref<1x32xf32, #tpu.memory_space<vmem>>, %arg2: memref<1x1xf32, #tpu.memory_space<smem>>, %arg3: memref<1x1xf32, #tpu.memory_space<smem>>, %arg4: memref<1x1xf32, #tpu.memory_space<smem>>, %arg5: memref<8x1xf32, #tpu.memory_space<vmem>>) attributes {dimension_semantics = [], scalar_prefetch = 0 : i64, scratch_operands = 0 : i64, tpu.core_type = #tpu.core_type<tc>} {
    %c0 = arith.constant 0 : index
    %c0_0 = arith.constant 0 : index
    %0 = vector.load %arg0[%c0, %c0_0] : memref<8x32xf32, #tpu.memory_space<vmem>>, vector<8x32xf32>
    %c0_1 = arith.constant 0 : index
    %c0_2 = arith.constant 0 : index
    %1 = vector.load %arg1[%c0_1, %c0_2] : memref<1x32xf32, #tpu.memory_space<vmem>>, vector<1x32xf32>
    %2 = vector.broadcast %1 : vector<1x32xf32> to vector<8x32xf32>
    %3 = arith.mulf %0, %2 : vector<8x32xf32>
    %cst = arith.constant dense<0.000000e+00> : vector<8xf32>
    %4 = vector.multi_reduction <add>, %3, %cst [1] : vector<8x32xf32> to vector<8xf32>
    %5 = vector.shape_cast %4 : vector<8xf32> to vector<8x1xf32>
    %c0_3 = arith.constant 0 : index
    %c0_4 = arith.constant 0 : index
    %6 = memref.load %arg2[%c0_3, %c0_4] : memref<1x1xf32, #tpu.memory_space<smem>>
    %7 = vector.broadcast %6 : f32 to vector<8x1xf32>
    %8 = arith.addf %5, %7 : vector<8x1xf32>
    %9 = math.tanh %8 : vector<8x1xf32>
    %cst_5 = arith.constant dense<0.000000e+00> : vector<1xf32>
    %10 = vector.multi_reduction <add>, %9, %cst_5 [0] : vector<8x1xf32> to vector<1xf32>
    %11 = vector.shape_cast %10 : vector<1xf32> to vector<1x1xf32>
    %cst_6 = arith.constant 8.000000e+00 : f32
    %12 = vector.broadcast %cst_6 : f32 to vector<1x1xf32>
    %13 = arith.divf %11, %12 : vector<1x1xf32>
    %14 = vector.broadcast %13 : vector<1x1xf32> to vector<8x1xf32>
    %15 = arith.subf %9, %14 : vector<8x1xf32>
    %16 = arith.mulf %15, %15 : vector<8x1xf32>
    %cst_7 = arith.constant dense<0.000000e+00> : vector<1xf32>
    %17 = vector.multi_reduction <add>, %16, %cst_7 [0] : vector<8x1xf32> to vector<1xf32>
    %18 = vector.shape_cast %17 : vector<1xf32> to vector<1x1xf32>
    %cst_8 = arith.constant 8.000000e+00 : f32
    %19 = vector.broadcast %cst_8 : f32 to vector<1x1xf32>
    %20 = arith.divf %18, %19 : vector<1x1xf32>
    %c0_9 = arith.constant 0 : index
    %c0_10 = arith.constant 0 : index
    %21 = memref.load %arg3[%c0_9, %c0_10] : memref<1x1xf32, #tpu.memory_space<smem>>
    %cst_11 = arith.constant 9.99999974E-6 : f32
    %22 = vector.broadcast %cst_11 : f32 to vector<1x1xf32>
    %23 = arith.addf %20, %22 : vector<1x1xf32>
    %24 = math.rsqrt %23 : vector<1x1xf32>
    %25 = vector.broadcast %21 : f32 to vector<1x1xf32>
    %26 = arith.mulf %25, %24 : vector<1x1xf32>
    %c0_12 = arith.constant 0 : index
    %c0_13 = arith.constant 0 : index
    %27 = memref.load %arg4[%c0_12, %c0_13] : memref<1x1xf32, #tpu.memory_space<smem>>
    %28 = arith.mulf %13, %26 : vector<1x1xf32>
    %29 = vector.broadcast %27 : f32 to vector<1x1xf32>
    %30 = arith.subf %29, %28 : vector<1x1xf32>
    %31 = vector.broadcast %26 : vector<1x1xf32> to vector<8x1xf32>
    %32 = arith.mulf %9, %31 : vector<8x1xf32>
    %33 = vector.broadcast %30 : vector<1x1xf32> to vector<8x1xf32>
    %34 = arith.addf %32, %33 : vector<8x1xf32>
    %c0_14 = arith.constant 0 : index
    %c0_15 = arith.constant 0 : index
    %35 = vector.load %arg5[%c0_14, %c0_15] : memref<8x1xf32, #tpu.memory_space<vmem>>, vector<8x1xf32>
    tpu.vector_store %arg5[%c0_14, %c0_15], %34 {strides = array<i32>} : memref<8x1xf32, #tpu.memory_space<vmem>>, vector<8x1xf32>,
    return
  }
}

</mosaic_0001>

<llo_original>
// kernel: tpu_custom_call.1
$region0: #{tpu_custom_call.1}
  #allocation0 [shape = 'u32[]', space=smem, size = 0x4, offset = 0x4, fixed_abs, tag = 'smem constant byte address 0x4 - core index']
  #allocation1 [shape = 'u32[144,128]{1,0:T(1,128)}', space=vmem, size = 0x12000, scoped, tag = 'internal scratch']
  #allocation2 [shape = 'f32[1,1]{1,0:T(1,128)S(6)}', space=smem, size = 0x200, scoped, tag = 'scoped memory for tpu_custom_call.1']
  #allocation3 [shape = 'f32[1,1]{1,0:T(1,128)S(6)}', space=smem, size = 0x200, scoped, tag = 'scoped memory for tpu_custom_call.1']
  #allocation4 [shape = 'f32[1,1]{1,0:T(1,128)S(6)}', space=smem, size = 0x200, scoped, tag = 'scoped memory for tpu_custom_call.1']
  %s0 = inlined_call_operand.hbm [shape: f32[8,32], index: 0, kind: input, shape index: {}]
  %s1 = inlined_call_operand.vmem [shape: f32[1,32], index: 1, kind: input, shape index: {}]
  %s2 = inlined_call_operand.<no memory space> [shape: f32[1,1], index: 2, kind: input, shape index: {}]
  %s3 = inlined_call_operand.<no memory space> [shape: f32[1,1], index: 3, kind: input, shape index: {}]
  %s4 = inlined_call_operand.<no memory space> [shape: f32[1,1], index: 4, kind: input, shape index: {}]
  %s5 = inlined_call_operand.vmem [shape: f32[8,1], index: 5, kind: output, shape index: {}]
  %s6 = sld [smem:[#allocation0]]
  $region34: #{tpu_custom_call.1} parent=0
    _
  %s8 = ssub.s32 1, %s6
  %s9 = scalar_select 0, %s8, %s6
  %10 = sst [smem:[#allocation2]] %s2
  %11 = sst [smem:[#allocation3]] %s3
  %12 = sst [smem:[#allocation4]] %s4
  $region1: #{tpu_custom_call.1} parent=0
    #allocation5 [shape = 'u8[4096]{0}', space=vmem, size = 0x1000, scoped, tag = 'input window, operand 0, single buffered']
    #allocation6 [shape = 's32[1]{0}', space=sflag, size = 0x4, scoped, tag = 'scoped memory for tpu_custom_call.1']
    %13 = vsyncpa [#allocation6], 0
    // Predicated region
    $region2: #{tpu_custom_call.1} parent=1 // pred_check
      _
    $region3: #{tpu_custom_call.1} parent=1 // pred_check_branch
      %15 = sbr.rel (0) target = $region5
    $region4: #{tpu_custom_call.1} parent=1 // pred_region
      %s17 = ssub.s32 128, 128
      %18 = vsyncadd [#allocation6], %s17
      %s20 = sshll.u32 [#allocation5], 4
      %s21 = int_to_ptr.vmem [resolvable:$true] %s20
      %23 = dma.hbm_to_vmem [thread:$0]  %s0, 128, %s21, [#allocation6]
    $region5: #{tpu_custom_call.1} parent=1 // pred_fallthru
      _
    // Predicated region
    $region6: #{tpu_custom_call.1} parent=1 // pred_check
      _
    $region7: #{tpu_custom_call.1} parent=1 // pred_check_branch
      %25 = sbr.rel (0) target = $region9
    $region8: #{tpu_custom_call.1} parent=1 // pred_region
      _
    $region9: #{tpu_custom_call.1} parent=1 // pred_fallthru
      _
    // Predicated region
    $region10: #{tpu_custom_call.1} parent=1 // pred_check
      _
    $region11: #{tpu_custom_call.1} parent=1 // pred_check_branch
      %27 = sbr.rel (0) target = $region13
    $region12: #{tpu_custom_call.1} parent=1 // pred_region
      _
    $region13: #{tpu_custom_call.1} parent=1 // pred_fallthru
      _
    // Predicated region
    $region14: #{tpu_custom_call.1} parent=1 // pred_check
      _
    $region15: #{tpu_custom_call.1} parent=1 // pred_check_branch
      %29 = sbr.rel (0) target = $region17
    $region16: #{tpu_custom_call.1} parent=1 // pred_region
      _
    $region17: #{tpu_custom_call.1} parent=1 // pred_fallthru
      _
    // Predicated region
    $region18: #{tpu_custom_call.1} parent=1 // pred_check
      _
    $region19: #{tpu_custom_call.1} parent=1 // pred_check_branch
      %31 = sbr.rel (0) target = $region21
    $region20: #{tpu_custom_call.1} parent=1 // pred_region
      _
    $region21: #{tpu_custom_call.1} parent=1 // pred_fallthru
      _
    // Predicated region
    $region22: #{tpu_custom_call.1} parent=1 // pred_check
      _
    $region23: #{tpu_custom_call.1} parent=1 // pred_check_branch
      %33 = sbr.rel (0) target = $region25
    $region24: #{tpu_custom_call.1} parent=1 // pred_region
      %34 = dma.done [#allocation6], 128
    $region25: #{tpu_custom_call.1} parent=1 // pred_fallthru
      _
    %v35 = vld [vmem:[#allocation5] sm:$0xff]
    %v36 = vld [vmem:[%s1] sm:$0x1]
    %v38 = vlaneseq
    %v39 = vshrl.u32 %v38, 7
    %v40 = vsub.s32 0, %v39
    %v41 = vrot.slane %v36, %v40
    %v43 = vmul.f32 %v35, %v41
    %vm44 = vcmask 261120
    %v45 = vsel %vm44, %v43, 0.0
    %46 = vadd.xlane.f32.xlu0 %v45
    %v47 = vpop.xlane.xlu0 %46
    %s48 = sld [smem:[#allocation2]]
    %v49 = vstv %s48
    %v50 = vadd.f32 %v47, %v49
    %v51 = vtanh.pop %v50
    %v52 = vrot.slane %v51, 4
    %v53 = vadd.f32 %v51, %v52
    %v54 = vrot.slane %v53, 2
    %v55 = vadd.f32 %v53, %v54
    %v56 = vrot.slane %v55, 1
    %v57 = vadd.f32 %v55, %v56
    %v58 = vrcp.pop 8.0
    %v59 = vmul.f32 %v57, %v58
    %v60 = vsub.f32 %v51, %v59
    %v61 = vmul.f32 %v60, %v60
    %v62 = vrot.slane %v61, 4
    %v63 = vadd.f32 %v61, %v62
    %v64 = vrot.slane %v63, 2
    %v65 = vadd.f32 %v63, %v64
    %v66 = vrot.slane %v65, 1
    %v67 = vadd.f32 %v65, %v66
    %v68 = vmul.f32 %v67, %v58
    %s69 = sld [smem:[#allocation3]]
    %v70 = vadd.f32 %v68, 1e-05
    %v71 = vrsqrt.pop %v70
    %v72 = vstv %s69
    %v73 = vmul.f32 %v72, %v71
    %s74 = sld [smem:[#allocation4]]
    %v75 = vmul.f32 %v59, %v73
    %v76 = vstv %s74
    %v77 = vsub.f32 %v76, %v75
    %v78 = vmul.f32 %v51, %v73
    %v79 = vadd.f32 %v78, %v77
    %vm80 = vcmask 7168
    %81 = vst.msk [vmem:[%s5] sm:$0xff] %vm80, %v79
    // Predicated region
    $region26: #{tpu_custom_call.1} parent=1 // pred_check
      _
    $region27: #{tpu_custom_call.1} parent=1 // pred_check_branch
      %83 = sbr.rel (0) target = $region29
    $region28: #{tpu_custom_call.1} parent=1 // pred_region
      _
    $region29: #{tpu_custom_call.1} parent=1 // pred_fallthru
      _
    // Predicated region
    $region30: #{tpu_custom_call.1} parent=1 // pred_check
      _
    $region31: #{tpu_custom_call.1} parent=1 // pred_check_branch
      %85 = sbr.rel (0) target = $region33
    $region32: #{tpu_custom_call.1} parent=1 // pred_region
      _
    $region33: #{tpu_custom_call.1} parent=1 // pred_fallthru
      _
    %86 = vsyncpa [#allocation6], 1

</llo_original>
